<compile_context>
chip_gen: v5e
topology: v5e:2x2
jax: 0.10.0
libtpu: 0.0.40
codegen_flags: <defaults>
</compile_context>

<pallas_src>
import numpy as np
import jax
import jax.numpy as jnp
from jax.experimental import pallas as pl
from jax.experimental.pallas import tpu as pltpu

F = 56                     # features per person
NUM_KP = 17                # keypoints per person
KP_LANES = 3 * NUM_KP      # 51
PERSONS_PER_ROW = 16       # 16 * 56 = 896 = 7 * 128 -> lane-dense rows
LANES = F * PERSONS_PER_ROW


def _lane_masks():
    """Per-output-lane selectors, tiled to the 896-wide lane-dense layout."""
    j = np.arange(F)
    phase = j % 3
    kp = j < KP_LANES
    is_x = (kp & (phase == 0)) | (j == 51) | (j == 53)   # out[j] = in[j+1] * W
    is_y = (kp & (phase == 1)) | (j == 52) | (j == 54)   # out[j] = in[j-1] * H
    is_s = ~(is_x | is_y)                                # out[j] = in[j]
    tile = lambda m: np.tile(m.astype(np.float32), PERSONS_PER_ROW)   # (896,)
    return tile(is_x), tile(is_y), tile(is_s)


_MASK_X, _MASK_Y, _MASK_S = _lane_masks()


def _postprocess_kernel(scale_ref, x_ref, o_ref):
    # scale_ref: VMEM (3, 896) = [mask_x * W, mask_y * H, mask_s]; block index is
    #            constant across the grid so it is fetched once and stays resident.
    # x_ref / o_ref: VMEM (rows, 896) float32, 16 persons per row (lane-dense).
    x = x_ref[...]
    sx = scale_ref[0:1, :]
    sy = scale_ref[1:2, :]
    ms = scale_ref[2:3, :]
    # +/-1 lane shifts on the XLU.  The wrap-around lanes of each 896-wide row
    # land where the corresponding scale is 0 (lane 0 -> sy==0, lane 895 -> sx==0),
    # so rolling across person boundaries never leaks wrong values.
    nxt = pltpu.roll(x, shift=LANES - 1, axis=1)   # nxt[:, j] == x[:, (j + 1) % LANES]
    prv = pltpu.roll(x, shift=1, axis=1)           # prv[:, j] == x[:, (j - 1) % LANES]
    o_ref[...] = x * ms + nxt * sx + prv * sy


def _postprocess_xla(kws, image_height, image_width):
    """Pure-XLA path (mirrors the PyTorch forward); also used as the reference."""
    kws = jnp.asarray(kws, dtype=jnp.float32)
    h = jnp.asarray(image_height).astype(jnp.float32)
    w = jnp.asarray(image_width).astype(jnp.float32)
    B, P, _ = kws.shape
    kp = kws[..., :KP_LANES].reshape(B, P, NUM_KP, 3)
    kp_out = jnp.stack([kp[..., 1] * w, kp[..., 0] * h, kp[..., 2]],
                       axis=-1).reshape(B, P, KP_LANES)
    bx1 = kws[..., 52:53] * w
    by1 = kws[..., 51:52] * h
    bx2 = kws[..., 54:55] * w
    by2 = kws[..., 53:54] * h
    bs = kws[..., 55:56]
    return jnp.concatenate([kp_out, bx1, by1, bx2, by2, bs], axis=-1)


def movenet_postprocess(keypoints_with_scores, image_height, image_width, *,
                        rows_per_block=512, min_persons_for_kernel=4096):
    """JAX/Pallas equivalent of Model.forward (both optimize_myriad branches)."""
    kws = jnp.asarray(keypoints_with_scores, dtype=jnp.float32)
    B, P, feat = kws.shape
    assert feat == F, f"expected last dim {F}, got {feat}"
    N = B * P

    if N < min_persons_for_kernel:
        # MoveNet's default (1, 6, 56): kernel launch + DMA setup dominate by
        # orders of magnitude, so run the fused XLA elementwise instead.
        return _postprocess_xla(kws, image_height, image_width)

    assert rows_per_block % 8 == 0, "rows_per_block must be a multiple of 8"

    h = jnp.asarray(image_height).astype(jnp.float32)
    w = jnp.asarray(image_width).astype(jnp.float32)
    # Tiny (3, 896) scale table: [mask_x*W, mask_y*H, mask_s].  Building it on
    # the XLA side is negligible and removes all mask construction from the kernel.
    scales = jnp.stack(
        [jnp.asarray(_MASK_X) * w, jnp.asarray(_MASK_Y) * h, jnp.asarray(_MASK_S)],
        axis=0)

    # Lane-dense repack: pad persons to a multiple of 16, 16 persons per row.
    n_pad = -(-N // PERSONS_PER_ROW) * PERSONS_PER_ROW
    x = kws.reshape(N, F)
    if n_pad != N:
        x = jnp.pad(x, ((0, n_pad - N), (0, 0)))
    rows = n_pad // PERSONS_PER_ROW
    x = x.reshape(rows, LANES)

    tn = rows if rows <= rows_per_block else rows_per_block
    grid = (pl.cdiv(rows, tn),)

    out = pl.pallas_call(
        _postprocess_kernel,
        out_shape=jax.ShapeDtypeStruct((rows, LANES), jnp.float32),
        grid=grid,
        in_specs=[
            pl.BlockSpec((3, LANES), lambda i: (0, 0)),     # resident scale table
            pl.BlockSpec((tn, LANES), lambda i: (i, 0)),
        ],
        out_specs=pl.BlockSpec((tn, LANES), lambda i: (i, 0)),
        compiler_params=pltpu.CompilerParams(
            dimension_semantics=("parallel",),
        ),
    )(scales, x)

    out = out.reshape(n_pad, F)[:N]
    return out.reshape(B, P, F)


if __name__ == "__main__":
    k0, k1 = jax.random.split(jax.random.PRNGKey(0))
    image_height = jnp.array(192, dtype=jnp.int32)
    image_width = jnp.array(256, dtype=jnp.int32)

    # 1) Canonical MoveNet multipose shape forced through the Pallas kernel
    #    (exercises padding 6 -> 16 persons and the single lane-dense block).
    kws = jax.random.uniform(k0, (1, 6, 56), dtype=jnp.float32)
    out = jax.block_until_ready(
        movenet_postprocess(kws, image_height, image_width, min_persons_for_kernel=0))
    ref = jax.block_until_ready(_postprocess_xla(kws, image_height, image_width))
    assert out.shape == (1, 6, 56)
    np.testing.assert_allclose(np.asarray(out), np.asarray(ref), rtol=1e-5, atol=1e-5)

    # 2) Default dispatch at the canonical shape takes the XLA fast path.
    out_small = jax.block_until_ready(movenet_postprocess(kws, image_height, image_width))
    np.testing.assert_allclose(np.asarray(out_small), np.asarray(ref), rtol=1e-5, atol=1e-5)

    # 3) Larger batch through the tiled kernel path with a small block size to
    #    exercise the multi-step "parallel" grid and a ragged final block
    #    (rows=64, tn=24 -> grid=3, last block has 16 valid rows).
    kws2 = jax.random.uniform(k1, (2, 512, 56), dtype=jnp.float32)
    out2 = jax.block_until_ready(
        movenet_postprocess(kws2, image_height, image_width,
                            rows_per_block=24, min_persons_for_kernel=0))
    ref2 = jax.block_until_ready(_postprocess_xla(kws2, image_height, image_width))
    np.testing.assert_allclose(np.asarray(out2), np.asarray(ref2), rtol=1e-5, atol=1e-5)

    print("KERNEL_OK")
</pallas_src>

<mosaic_0001>
module attributes {stable_mosaic.version = 11 : i64} {
  func.func @_postprocess_kernel(%arg0: i32, %arg1: memref<3x896xf32, #tpu.memory_space<vmem>>, %arg2: memref<1x896xf32, #tpu.memory_space<vmem>>, %arg3: memref<1x896xf32, #tpu.memory_space<vmem>>) attributes {dimension_semantics = [#tpu.dimension_semantics<parallel>], iteration_bounds = array<i64: 1>, scalar_prefetch = 0 : i64, scratch_operands = 0 : i64, tpu.core_type = #tpu.core_type<tc>, window_params = [{pipeline_mode = #tpu.pipeline_mode<synchronous>, transform_indices = @transform_0, window_bounds = array<i64: 3, 896>}, {transform_indices = @transform_1, window_bounds = array<i64: 1, 896>}, {transform_indices = @transform_2, window_bounds = array<i64: 1, 896>}]} {
    %c0 = arith.constant 0 : index
    %c0_0 = arith.constant 0 : index
    %0 = vector.load %arg2[%c0, %c0_0] : memref<1x896xf32, #tpu.memory_space<vmem>>, vector<1x896xf32>
    %c0_1 = arith.constant 0 : index
    %c0_2 = arith.constant 0 : index
    %1 = vector.load %arg1[%c0_1, %c0_2] : memref<3x896xf32, #tpu.memory_space<vmem>>, vector<1x896xf32>
    %c1 = arith.constant 1 : index
    %c0_3 = arith.constant 0 : index
    %2 = vector.load %arg1[%c1, %c0_3] : memref<3x896xf32, #tpu.memory_space<vmem>>, vector<1x896xf32>
    %c2 = arith.constant 2 : index
    %c0_4 = arith.constant 0 : index
    %3 = vector.load %arg1[%c2, %c0_4] : memref<3x896xf32, #tpu.memory_space<vmem>>, vector<1x896xf32>
    %c895_i32 = arith.constant 895 : i32
    %4 = tpu.dynamic_rotate %0 by %c895_i32 dim 1 : vector<1x896xf32>, i32 -> vector<1x896xf32>
    %c1_i32 = arith.constant 1 : i32
    %5 = tpu.dynamic_rotate %0 by %c1_i32 dim 1 : vector<1x896xf32>, i32 -> vector<1x896xf32>
    %6 = arith.mulf %0, %3 : vector<1x896xf32>
    %7 = arith.mulf %4, %1 : vector<1x896xf32>
    %8 = arith.addf %6, %7 : vector<1x896xf32>
    %9 = arith.mulf %5, %2 : vector<1x896xf32>
    %10 = arith.addf %8, %9 : vector<1x896xf32>
    %c0_5 = arith.constant 0 : index
    %c0_6 = arith.constant 0 : index
    %11 = vector.load %arg3[%c0_5, %c0_6] : memref<1x896xf32, #tpu.memory_space<vmem>>, vector<1x896xf32>
    tpu.vector_store %arg3[%c0_5, %c0_6], %10 {strides = array<i32>} : memref<1x896xf32, #tpu.memory_space<vmem>>, vector<1x896xf32>,
    return
  }
  func.func @transform_0(%arg0: i32) -> (i32, i32) {
    %c0_i32 = arith.constant 0 : i32
    %c0_i32_0 = arith.constant 0 : i32
    %c0_i32_1 = arith.constant 0 : i32
    return %c0_i32, %c0_i32_0 : i32, i32
  }
  func.func @transform_1(%arg0: i32) -> (i32, i32) {
    %c0_i32 = arith.constant 0 : i32
    %c0_i32_0 = arith.constant 0 : i32
    return %arg0, %c0_i32 : i32, i32
  }
  func.func @transform_2(%arg0: i32) -> (i32, i32) {
    %c0_i32 = arith.constant 0 : i32
    %c0_i32_0 = arith.constant 0 : i32
    return %arg0, %c0_i32 : i32, i32
  }
}

</mosaic_0001>

<llo_original>
// kernel: tpu_custom_call.1
$region0: #{tpu_custom_call.1}
  #allocation0 [shape = 'u32[]', space=smem, size = 0x4, offset = 0x4, fixed_abs, tag = 'smem constant byte address 0x4 - core index']
  #allocation1 [shape = 'u32[72,128]{1,0:T(1,128)}', space=vmem, size = 0x9000, scoped, tag = 'internal scratch']
  %s0 = inlined_call_operand.hbm [shape: f32[3,896], index: 0, kind: input, shape index: {}]
  %s1 = inlined_call_operand.hbm [shape: f32[1,896], index: 1, kind: input, shape index: {}]
  %s2 = inlined_call_operand.hbm [shape: f32[1,896], index: 2, kind: output, shape index: {}]
  %s3 = sld [smem:[#allocation0]]
  $region26: #{tpu_custom_call.1} parent=0
    _
  %s5 = ssub.s32 1, %s3
  %s6 = scalar_select 0, %s5, %s3
  $region1: #{tpu_custom_call.1} parent=0
    #allocation2 [shape = 'u8[14336]{0}', space=vmem, size = 0x3800, scoped, tag = 'input window, operand 0, single buffered']
    #allocation3 [shape = 's32[1]{0}', space=sflag, size = 0x4, scoped, tag = 'scoped memory for tpu_custom_call.1']
    #allocation4 [shape = 's32[1]{0}', space=sflag, size = 0x4, scoped, tag = 'scoped memory for tpu_custom_call.1']
    #allocation5 [shape = 'u8[3584]{0}', space=vmem, size = 0x1000, scoped, tag = 'input window, operand 1, single buffered']
    #allocation6 [shape = 's32[1]{0}', space=sflag, size = 0x4, scoped, tag = 'scoped memory for tpu_custom_call.1']
    #allocation7 [shape = 'u8[3584]{0}', space=vmem, size = 0x1000, scoped, tag = 'output window, operand 0, single buffered']
    %7 = vsyncpa [#allocation3], 0
    %8 = vsyncpa [#allocation6], 0
    %9 = vsyncpa [#allocation4], 0
    // Predicated region
    $region2: #{tpu_custom_call.1} parent=1 // pred_check
      _
    $region3: #{tpu_custom_call.1} parent=1 // pred_check_branch
      %11 = sbr.rel (0) target = $region5
    $region4: #{tpu_custom_call.1} parent=1 // pred_region
      %13 = vsyncadd [#allocation3], 0
      %s15 = sshll.u32 %s0, 4
      %s16 = int_to_ptr.hbm [resolvable:$true] %s15
      %s17 = sshll.u32 [#allocation2], 4
      %s18 = int_to_ptr.vmem [resolvable:$true] %s17
      %20 = dma.hbm_to_vmem [thread:$0]  %s16, 448, %s18, [#allocation3]
    $region5: #{tpu_custom_call.1} parent=1 // pred_fallthru
      _
    // Predicated region
    $region6: #{tpu_custom_call.1} parent=1 // pred_check
      _
    $region7: #{tpu_custom_call.1} parent=1 // pred_check_branch
      %22 = sbr.rel (0) target = $region9
    $region8: #{tpu_custom_call.1} parent=1 // pred_region
      %24 = vsyncadd [#allocation6], 0
      %s26 = sshll.u32 %s1, 4
      %s27 = int_to_ptr.hbm [resolvable:$true] %s26
      %s28 = sshll.u32 [#allocation5], 4
      %s29 = int_to_ptr.vmem [resolvable:$true] %s28
      %31 = dma.hbm_to_vmem [thread:$0]  %s27, 112, %s29, [#allocation6]
    $region9: #{tpu_custom_call.1} parent=1 // pred_fallthru
      _
    // Predicated region
    $region10: #{tpu_custom_call.1} parent=1 // pred_check
      _
    $region11: #{tpu_custom_call.1} parent=1 // pred_check_branch
      %33 = sbr.rel (0) target = $region13
    $region12: #{tpu_custom_call.1} parent=1 // pred_region
      %35 = dma.done [#allocation3], 448
    $region13: #{tpu_custom_call.1} parent=1 // pred_fallthru
      _
    // Predicated region
    $region14: #{tpu_custom_call.1} parent=1 // pred_check
      _
    $region15: #{tpu_custom_call.1} parent=1 // pred_check_branch
      %37 = sbr.rel (0) target = $region17
    $region16: #{tpu_custom_call.1} parent=1 // pred_region
      %39 = dma.done [#allocation6], 112
    $region17: #{tpu_custom_call.1} parent=1 // pred_fallthru
      _
    %v40 = vld [vmem:[#allocation5] sm:$0xff]
    %v41 = vld [vmem:[#allocation2] ss:$4 sm:$0xff]
    %s42 = scalar_lea.vmem [#allocation2], 1
    %v43 = vld [vmem:[%s42] ss:$4 sm:$0xff]
    %s44 = scalar_lea.vmem [#allocation2], 2
    %v45 = vld [vmem:[%s44] ss:$4 sm:$0xff]
    %v47 = vperm.slane %v40, 0
    %v48 = vperm.slane %v40, 1
    %v49 = vperm.slane %v40, 2
    %v50 = vperm.slane %v40, 3
    %v51 = vperm.slane %v40, 4
    %v52 = vperm.slane %v40, 5
    %v53 = vperm.slane %v40, 6
    %61 = vrot.lane.b32.xlu0 %v47, 127
    %v62 = vpop.permute.xlu0 %61
    %63 = vrot.lane.b32.xlu0 %v48, 127
    %v64 = vpop.permute.xlu0 %63
    %65 = vrot.lane.b32.xlu0 %v49, 127
    %v66 = vpop.permute.xlu0 %65
    %67 = vrot.lane.b32.xlu0 %v50, 127
    %v68 = vpop.permute.xlu0 %67
    %69 = vrot.lane.b32.xlu0 %v51, 127
    %v70 = vpop.permute.xlu0 %69
    %71 = vrot.lane.b32.xlu0 %v52, 127
    %v72 = vpop.permute.xlu0 %71
    %73 = vrot.lane.b32.xlu0 %v53, 127
    %v74 = vpop.permute.xlu0 %73
    %v75 = vlaneseq
    %v76 = vand.u32 %v75, 127
    %vm77 = vcmp.lt.s32.totalorder %v76, 127
    %v78 = vsel %vm77, %v72, %v74
    %v79 = vsel %vm77, %v70, %v72
    %v80 = vsel %vm77, %v68, %v70
    %v81 = vsel %vm77, %v66, %v68
    %v82 = vsel %vm77, %v64, %v66
    %v83 = vsel %vm77, %v62, %v64
    %v84 = vsel %vm77, %v74, %v62
    %85 = vrot.lane.b32.xlu0 %v47, 1
    %v86 = vpop.permute.xlu0 %85
    %87 = vrot.lane.b32.xlu0 %v48, 1
    %v88 = vpop.permute.xlu0 %87
    %89 = vrot.lane.b32.xlu0 %v49, 1
    %v90 = vpop.permute.xlu0 %89
    %91 = vrot.lane.b32.xlu0 %v50, 1
    %v92 = vpop.permute.xlu0 %91
    %93 = vrot.lane.b32.xlu0 %v51, 1
    %v94 = vpop.permute.xlu0 %93
    %95 = vrot.lane.b32.xlu0 %v52, 1
    %v96 = vpop.permute.xlu0 %95
    %97 = vrot.lane.b32.xlu0 %v53, 1
    %v98 = vpop.permute.xlu0 %97
    %vm99 = vcmp.lt.s32.totalorder %v76, 1
    %v100 = vsel %vm99, %v96, %v98
    %v101 = vsel %vm99, %v94, %v96
    %v102 = vsel %vm99, %v92, %v94
    %v103 = vsel %vm99, %v90, %v92
    %v104 = vsel %vm99, %v88, %v90
    %v105 = vsel %vm99, %v86, %v88
    %v106 = vsel %vm99, %v98, %v86
    %v107 = vmul.f32 %v40, %v45
    %v109 = vperm.slane %v41, 0
    %v110 = vperm.slane %v41, 1
    %v111 = vperm.slane %v41, 2
    %v112 = vperm.slane %v41, 3
    %v113 = vperm.slane %v41, 4
    %v114 = vperm.slane %v41, 5
    %v115 = vperm.slane %v41, 6
    %v123 = vmul.f32 %v83, %v109
    %v124 = vmul.f32 %v82, %v110
    %v125 = vmul.f32 %v81, %v111
    %v126 = vmul.f32 %v80, %v112
    %v127 = vmul.f32 %v79, %v113
    %v128 = vmul.f32 %v78, %v114
    %v129 = vmul.f32 %v84, %v115
    %v137 = vrot.slane %v124, 7
    %v138 = vrot.slane %v125, 6
    %v139 = vrot.slane %v126, 5
    %v140 = vrot.slane %v127, 4
    %v141 = vrot.slane %v128, 3
    %v142 = vrot.slane %v129, 2
    %vm143 = vcmask 1040384
    %v144 = vsel %vm143, %v123, %v137
    %vm145 = vcmask 1042434
    %v146 = vsel %vm145, %v138, %v139
    %vm147 = vcmask 1041408
    %v148 = vsel %vm147, %v144, %v146
    %vm149 = vcmask 1044484
    %v150 = vsel %vm149, %v140, %v141
    %vm151 = vcmask 1045508
    %v152 = vsel %vm151, %v150, %v142
    %vm153 = vcmask 1043456
    %v154 = vsel %vm153, %v148, %v152
    %v156 = vadd.f32 %v107, %v154
    %v158 = vperm.slane %v43, 0
    %v159 = vperm.slane %v43, 1
    %v160 = vperm.slane %v43, 2
    %v161 = vperm.slane %v43, 3
    %v162 = vperm.slane %v43, 4
    %v163 = vperm.slane %v43, 5
    %v164 = vperm.slane %v43, 6
    %v172 = vmul.f32 %v106, %v158
    %v173 = vmul.f32 %v105, %v159
    %v174 = vmul.f32 %v104, %v160
    %v175 = vmul.f32 %v103, %v161
    %v176 = vmul.f32 %v102, %v162
    %v177 = vmul.f32 %v101, %v163
    %v178 = vmul.f32 %v100, %v164
    %v186 = vrot.slane %v173, 7
    %v187 = vrot.slane %v174, 6
    %v188 = vrot.slane %v175, 5
    %v189 = vrot.slane %v176, 4
    %v190 = vrot.slane %v177, 3
    %v191 = vrot.slane %v178, 2
    %v192 = vsel %vm143, %v172, %v186
    %v193 = vsel %vm145, %v187, %v188
    %v194 = vsel %vm147, %v192, %v193
    %v195 = vsel %vm149, %v189, %v190
    %v196 = vsel %vm151, %v195, %v191
    %v197 = vsel %vm153, %v194, %v196
    %v199 = vadd.f32 %v156, %v197
    %v200 = vlaneseq
    %vm201 = vcmp.ge.s32.totalorder %v200, 0
    %vm202 = vcmp.lt.s32.totalorder %v200, 896
    %vm203 = vmand %vm201, %vm202
    %204 = vst.msk [vmem:[#allocation7] sm:$0x7f] %vm203, %v199
    // Predicated region
    $region18: #{tpu_custom_call.1} parent=1 // pred_check
      _
    $region19: #{tpu_custom_call.1} parent=1 // pred_check_branch
      %206 = sbr.rel (0) target = $region21
    $region20: #{tpu_custom_call.1} parent=1 // pred_region
      %208 = vsyncadd [#allocation4], 0
      %s210 = sshll.u32 [#allocation7], 4
      %s211 = int_to_ptr.vmem [resolvable:$true] %s210
      %s212 = sshll.u32 %s2, 4
      %s213 = int_to_ptr.hbm [resolvable:$true] %s212
      %215 = dma.vmem_to_hbm [thread:$0]  %s211, 112, %s213, [#allocation4]
    $region21: #{tpu_custom_call.1} parent=1 // pred_fallthru
      _
    // Predicated region
    $region22: #{tpu_custom_call.1} parent=1 // pred_check
      _
    $region23: #{tpu_custom_call.1} parent=1 // pred_check_branch
      %217 = sbr.rel (0) target = $region25
    $region24: #{tpu_custom_call.1} parent=1 // pred_region
      %219 = dma.done [#allocation4], 112
    $region25: #{tpu_custom_call.1} parent=1 // pred_fallthru
      _
    %220 = vsyncpa [#allocation3], 1
    %221 = vsyncpa [#allocation6], 1
    %222 = vsyncpa [#allocation4], 1

</llo_original>
